<compile_context>
chip_gen: v7x
topology: tpu7x:2x2x1
jax: 0.10.0
libtpu: 0.0.40
codegen_flags: <defaults>
</compile_context>

<pallas_src>
import jax
import jax.numpy as jnp
from jax import lax
from jax.experimental import pallas as pl
from jax.experimental.pallas import tpu as pltpu

EPS = 1e-5  # nn.BatchNorm2d default eps


def _round_up(x, m):
    return ((x + m - 1) // m) * m


# ---------------------------------------------------------------------------
# Pass 1: conv matmul + per-shard per-channel sum / sumsq accumulation.
# ---------------------------------------------------------------------------
def conv_stats_kernel(p_ref, w_ref, y_ref, sum_ref, sq_ref):
    # p_ref:   [tm, Kpad]      bf16 im2col patches tile
    # w_ref:   [Kpad, Cpad]    bf16 flattened conv weight (whole, resident)
    # y_ref:   [tm, Cpad]      f32 conv output tile
    # sum_ref: [1, Cpad]       f32 per-channel sum accumulator (this shard's slab)
    # sq_ref:  [1, Cpad]       f32 per-channel sum-of-squares accumulator
    i = pl.program_id(1)   # inner ("arbitrary") M-tile axis within this shard

    y = jnp.dot(p_ref[...], w_ref[...], preferred_element_type=jnp.float32)
    y_ref[...] = y

    @pl.when(i == 0)
    def _():
        sum_ref[...] = jnp.zeros_like(sum_ref)
        sq_ref[...] = jnp.zeros_like(sq_ref)

    sum_ref[...] += jnp.sum(y, axis=0, keepdims=True)
    sq_ref[...] += jnp.sum(y * y, axis=0, keepdims=True)


# ---------------------------------------------------------------------------
# Pass 2: fused BN affine, o = y * scale + shift.
# ---------------------------------------------------------------------------
def bn_apply_kernel(y_ref, scale_ref, shift_ref, o_ref):
    o_ref[...] = y_ref[...] * scale_ref[...] + shift_ref[...]


# ---------------------------------------------------------------------------
# Wrapper
# ---------------------------------------------------------------------------
def im2col_nchw(x, kh, kw):
    """x: [N, C, H, W] -> patches [N*H*W, C*kh*kw] (stride 1, 'same' padding)."""
    n, c, h, w = x.shape
    ph, pw = kh // 2, kw // 2
    xp = jnp.pad(x, ((0, 0), (0, 0), (ph, ph), (pw, pw)))
    tiles = []
    for i in range(kh):
        for j in range(kw):
            tiles.append(xp[:, :, i:i + h, j:j + w])      # [N, C, H, W]
    p = jnp.stack(tiles, axis=2)                          # [N, C, kh*kw, H, W]
    p = p.transpose(0, 3, 4, 1, 2)                        # [N, H, W, C, kh*kw]
    return p.reshape(n * h * w, c * kh * kw)


def reset_layer_forward(x, conv_w, conv_b, bn_gamma, bn_beta, *, tm=512,
                        stats_shards=2):
    """x: [N, Cin, H, W] NCHW. conv_w: [Cout, Cin, KH, KW]. Returns [N, Cout, H, W].

    tm: row-tile over M = N*H*W (multiple of 8).  512 is a good default on
    v5e/v6e; VMEM use stays well under the 48 MiB scoped limit even for
    Cin=Cout=512 3x3 layers, and fits v7x's smaller VMEM too.
    stats_shards: leading "parallel" grid axis for pass 1 (megacore on v7x).
    """
    n, cin, h, w = x.shape
    cout, _, kh, kw = conv_w.shape
    m = n * h * w
    k = cin * kh * kw

    # Lane/sublane alignment: K and Cout padded to 128 (lane-dense matmul tiles,
    # unmasked output stores); M padded to shards * inner_tiles * tm.
    kpad = _round_up(k, 128)
    cpad = _round_up(cout, 128)
    tm = _round_up(min(tm, _round_up(m, 8)), 8)
    grid_m = pl.cdiv(m, tm)
    nc = stats_shards if grid_m >= stats_shards else 1
    grid_inner = pl.cdiv(grid_m, nc)
    m_pad = nc * grid_inner * tm

    # im2col in NHWC-flattened order, built directly in bf16 (MXU operand dtype,
    # f32 accumulation happens inside the kernel).
    patches = im2col_nchw(x.astype(jnp.bfloat16), kh, kw)          # [M, K] bf16
    patches = jnp.pad(patches, ((0, m_pad - m), (0, kpad - k)))

    w_flat = conv_w.reshape(cout, k).T.astype(jnp.float32)          # [K, Cout]
    w_flat = jnp.pad(w_flat, ((0, kpad - k), (0, cpad - cout))).astype(jnp.bfloat16)

    # Conv bias is mathematically cancelled by the BN mean subtraction.
    del conv_b

    cparams_p1 = pltpu.CompilerParams(
        dimension_semantics=("parallel", "arbitrary"),  # shards x stats-accumulate
        vmem_limit_bytes=48 * 1024 * 1024,
    )
    cparams_p2 = pltpu.CompilerParams(
        dimension_semantics=("parallel",),              # independent M tiles
        vmem_limit_bytes=48 * 1024 * 1024,
    )

    # ---- Pass 1: conv matmul + per-channel statistics -----------------------
    y, ch_sum, ch_sq = pl.pallas_call(
        conv_stats_kernel,
        out_shape=(
            jax.ShapeDtypeStruct((m_pad, cpad), jnp.float32),
            jax.ShapeDtypeStruct((1, nc * cpad), jnp.float32),   # per-shard slabs
            jax.ShapeDtypeStruct((1, nc * cpad), jnp.float32),
        ),
        grid=(nc, grid_inner),
        in_specs=[
            pl.BlockSpec((tm, kpad), lambda c, i: (c * grid_inner + i, 0)),
            pl.BlockSpec((kpad, cpad), lambda c, i: (0, 0)),
        ],
        out_specs=(
            pl.BlockSpec((tm, cpad), lambda c, i: (c * grid_inner + i, 0)),
            pl.BlockSpec((1, cpad), lambda c, i: (0, c)),
            pl.BlockSpec((1, cpad), lambda c, i: (0, c)),
        ),
        compiler_params=cparams_p1,
    )(patches, w_flat)

    # ---- Tiny per-channel math (plain JAX): fused BN scale/shift ------------
    # Padded M rows are exact zeros -> contribute nothing; divide by the real M.
    inv_m = 1.0 / float(m)
    mean = ch_sum.reshape(nc, cpad).sum(axis=0, keepdims=True) * inv_m
    ex2 = ch_sq.reshape(nc, cpad).sum(axis=0, keepdims=True) * inv_m
    var = jnp.maximum(ex2 - mean * mean, 0.0)
    gamma_pad = jnp.pad(bn_gamma.astype(jnp.float32).reshape(1, cout),
                        ((0, 0), (0, cpad - cout)), constant_values=1.0)
    beta_pad = jnp.pad(bn_beta.astype(jnp.float32).reshape(1, cout),
                       ((0, 0), (0, cpad - cout)))
    scale = gamma_pad * lax.rsqrt(var + EPS)
    shift = beta_pad - mean * scale

    # ---- Pass 2: apply fused affine ------------------------------------------
    out = pl.pallas_call(
        bn_apply_kernel,
        out_shape=jax.ShapeDtypeStruct((m_pad, cpad), jnp.float32),
        grid=(m_pad // tm,),
        in_specs=[
            pl.BlockSpec((tm, cpad), lambda i: (i, 0)),
            pl.BlockSpec((1, cpad), lambda i: (0, 0)),
            pl.BlockSpec((1, cpad), lambda i: (0, 0)),
        ],
        out_specs=pl.BlockSpec((tm, cpad), lambda i: (i, 0)),
        compiler_params=cparams_p2,
    )(y, scale, shift)

    # Kernel output is NHWC-flattened (lane-dense); transpose to NCHW once here.
    return out[:m, :cout].reshape(n, h, w, cout).transpose(0, 3, 1, 2)


# ---------------------------------------------------------------------------
# Pure-JAX reference: Conv2d(padding='same') + bias + BatchNorm2d (batch stats).
# Conv operands cast to bf16 to match the kernel's MXU precision (f32 accum).
# ---------------------------------------------------------------------------
def reference_forward(x, conv_w, conv_b, bn_gamma, bn_beta):
    y = lax.conv_general_dilated(
        x.astype(jnp.bfloat16), conv_w.astype(jnp.bfloat16),
        window_strides=(1, 1), padding="SAME",
        dimension_numbers=("NCHW", "OIHW", "NCHW"),
        preferred_element_type=jnp.float32)
    y = y + conv_b.reshape(1, -1, 1, 1).astype(jnp.float32)
    mean = jnp.mean(y, axis=(0, 2, 3), keepdims=True)
    var = jnp.mean((y - mean) ** 2, axis=(0, 2, 3), keepdims=True)
    y = (y - mean) * lax.rsqrt(var + EPS)
    return y * bn_gamma.reshape(1, -1, 1, 1) + bn_beta.reshape(1, -1, 1, 1)


if __name__ == "__main__":
    key = jax.random.PRNGKey(0)
    k1, k2, k3, k4, k5 = jax.random.split(key, 5)

    N, CIN, H, W = 2, 4, 16, 16
    COUT, KH, KW = 8, 3, 3

    x = jax.random.normal(k1, (N, CIN, H, W), dtype=jnp.float32)
    conv_w = jax.random.normal(k2, (COUT, CIN, KH, KW), dtype=jnp.float32) * 0.1
    conv_b = jax.random.normal(k3, (COUT,), dtype=jnp.float32) * 0.1
    bn_gamma = 1.0 + 0.1 * jax.random.normal(k4, (COUT,), dtype=jnp.float32)
    bn_beta = 0.1 * jax.random.normal(k5, (COUT,), dtype=jnp.float32)

    # Small tm so the test exercises multiple M tiles, the stats accumulation
    # across the "arbitrary" axis and the per-shard stats combine.
    out = reset_layer_forward(x, conv_w, conv_b, bn_gamma, bn_beta, tm=128)
    out = jax.block_until_ready(out)

    ref = reference_forward(x, conv_w, conv_b, bn_gamma, bn_beta)
    assert out.shape == (N, COUT, H, W)
    err = float(jnp.max(jnp.abs(out - ref)))
    assert err < 2e-3, f"mismatch vs pure-JAX reference: max abs err = {err}"

    print("KERNEL_OK")
</pallas_src>

<mosaic_0001>
module attributes {stable_mosaic.version = 11 : i64} {
  func.func @conv_stats_kernel(%arg0: i32, %arg1: i32, %arg2: memref<128x128xbf16, #tpu.memory_space<vmem>>, %arg3: memref<128x128xbf16, #tpu.memory_space<vmem>>, %arg4: memref<128x128xf32, #tpu.memory_space<vmem>>, %arg5: memref<1x128xf32, #tpu.memory_space<vmem>>, %arg6: memref<1x128xf32, #tpu.memory_space<vmem>>) attributes {dimension_semantics = [#tpu.dimension_semantics<parallel>, #tpu.dimension_semantics<arbitrary>], iteration_bounds = array<i64: 2, 2>, scalar_prefetch = 0 : i64, scratch_operands = 0 : i64, tpu.core_type = #tpu.core_type<tc>, window_params = [{transform_indices = @transform_0, window_bounds = array<i64: 128, 128>}, {pipeline_mode = #tpu.pipeline_mode<synchronous>, transform_indices = @transform_1, window_bounds = array<i64: 128, 128>}, {transform_indices = @transform_2, window_bounds = array<i64: 128, 128>}, {transform_indices = @transform_3, window_bounds = array<i64: 1, 128>}, {transform_indices = @transform_4, window_bounds = array<i64: 1, 128>}]} {
    %c0 = arith.constant 0 : index
    %c0_0 = arith.constant 0 : index
    %0 = vector.load %arg2[%c0, %c0_0] : memref<128x128xbf16, #tpu.memory_space<vmem>>, vector<128x128xbf16>
    %c0_1 = arith.constant 0 : index
    %c0_2 = arith.constant 0 : index
    %1 = vector.load %arg3[%c0_1, %c0_2] : memref<128x128xbf16, #tpu.memory_space<vmem>>, vector<128x128xbf16>
    %cst = arith.constant dense<0.000000e+00> : vector<128x128xf32>
    %2 = tpu.matmul %0, %1, %cst {dimension_numbers = #tpu.dot_dimension_numbers<[1], [0], [0], [1], [0, 0, 1, 1], [], []>} : vector<128x128xbf16>, vector<128x128xbf16>, vector<128x128xf32> -> vector<128x128xf32>
    %c0_3 = arith.constant 0 : index
    %c0_4 = arith.constant 0 : index
    %3 = vector.load %arg4[%c0_3, %c0_4] : memref<128x128xf32, #tpu.memory_space<vmem>>, vector<128x128xf32>
    tpu.vector_store %arg4[%c0_3, %c0_4], %2 {strides = array<i32>} : memref<128x128xf32, #tpu.memory_space<vmem>>, vector<128x128xf32>,
    %c0_i32 = arith.constant 0 : i32
    %4 = arith.cmpi eq, %arg1, %c0_i32 : i32
    %5 = arith.extui %4 : i1 to i32
    %c0_i32_5 = arith.constant 0 : i32
    %6 = arith.cmpi ne, %5, %c0_i32_5 : i32
    scf.if %6 {
      %cst_16 = arith.constant 0.000000e+00 : f32
      %18 = vector.broadcast %cst_16 : f32 to vector<1x128xf32>
      %c0_17 = arith.constant 0 : index
      %c0_18 = arith.constant 0 : index
      %19 = vector.load %arg5[%c0_17, %c0_18] : memref<1x128xf32, #tpu.memory_space<vmem>>, vector<1x128xf32>
      tpu.vector_store %arg5[%c0_17, %c0_18], %18 {strides = array<i32>} : memref<1x128xf32, #tpu.memory_space<vmem>>, vector<1x128xf32>,
      %cst_19 = arith.constant 0.000000e+00 : f32
      %20 = vector.broadcast %cst_19 : f32 to vector<1x128xf32>
      %c0_20 = arith.constant 0 : index
      %c0_21 = arith.constant 0 : index
      %21 = vector.load %arg6[%c0_20, %c0_21] : memref<1x128xf32, #tpu.memory_space<vmem>>, vector<1x128xf32>
      tpu.vector_store %arg6[%c0_20, %c0_21], %20 {strides = array<i32>} : memref<1x128xf32, #tpu.memory_space<vmem>>, vector<1x128xf32>,
    } else {
    }
    %c0_6 = arith.constant 0 : index
    %c0_7 = arith.constant 0 : index
    %7 = vector.load %arg5[%c0_6, %c0_7] : memref<1x128xf32, #tpu.memory_space<vmem>>, vector<1x128xf32>
    %cst_8 = arith.constant dense<0.000000e+00> : vector<128xf32>
    %8 = vector.multi_reduction <add>, %2, %cst_8 [0] : vector<128x128xf32> to vector<128xf32>
    %9 = vector.shape_cast %8 : vector<128xf32> to vector<1x128xf32>
    %10 = arith.addf %7, %9 : vector<1x128xf32>
    %c0_9 = arith.constant 0 : index
    %c0_10 = arith.constant 0 : index
    %11 = vector.load %arg5[%c0_9, %c0_10] : memref<1x128xf32, #tpu.memory_space<vmem>>, vector<1x128xf32>
    tpu.vector_store %arg5[%c0_9, %c0_10], %10 {strides = array<i32>} : memref<1x128xf32, #tpu.memory_space<vmem>>, vector<1x128xf32>,
    %c0_11 = arith.constant 0 : index
    %c0_12 = arith.constant 0 : index
    %12 = vector.load %arg6[%c0_11, %c0_12] : memref<1x128xf32, #tpu.memory_space<vmem>>, vector<1x128xf32>
    %13 = arith.mulf %2, %2 : vector<128x128xf32>
    %cst_13 = arith.constant dense<0.000000e+00> : vector<128xf32>
    %14 = vector.multi_reduction <add>, %13, %cst_13 [0] : vector<128x128xf32> to vector<128xf32>
    %15 = vector.shape_cast %14 : vector<128xf32> to vector<1x128xf32>
    %16 = arith.addf %12, %15 : vector<1x128xf32>
    %c0_14 = arith.constant 0 : index
    %c0_15 = arith.constant 0 : index
    %17 = vector.load %arg6[%c0_14, %c0_15] : memref<1x128xf32, #tpu.memory_space<vmem>>, vector<1x128xf32>
    tpu.vector_store %arg6[%c0_14, %c0_15], %16 {strides = array<i32>} : memref<1x128xf32, #tpu.memory_space<vmem>>, vector<1x128xf32>,
    return
  }
  func.func @transform_0(%arg0: i32, %arg1: i32) -> (i32, i32) {
    %c2_i32 = arith.constant 2 : i32
    %0 = arith.muli %arg0, %c2_i32 : i32
    %1 = arith.addi %0, %arg1 : i32
    %c0_i32 = arith.constant 0 : i32
    %c0_i32_0 = arith.constant 0 : i32
    return %1, %c0_i32 : i32, i32
  }
  func.func @transform_1(%arg0: i32, %arg1: i32) -> (i32, i32) {
    %c0_i32 = arith.constant 0 : i32
    %c0_i32_0 = arith.constant 0 : i32
    %c0_i32_1 = arith.constant 0 : i32
    return %c0_i32, %c0_i32_0 : i32, i32
  }
  func.func @transform_2(%arg0: i32, %arg1: i32) -> (i32, i32) {
    %c2_i32 = arith.constant 2 : i32
    %0 = arith.muli %arg0, %c2_i32 : i32
    %1 = arith.addi %0, %arg1 : i32
    %c0_i32 = arith.constant 0 : i32
    %c0_i32_0 = arith.constant 0 : i32
    return %1, %c0_i32 : i32, i32
  }
  func.func @transform_3(%arg0: i32, %arg1: i32) -> (i32, i32) {
    %c0_i32 = arith.constant 0 : i32
    %c0_i32_0 = arith.constant 0 : i32
    return %c0_i32, %arg0 : i32, i32
  }
  func.func @transform_4(%arg0: i32, %arg1: i32) -> (i32, i32) {
    %c0_i32 = arith.constant 0 : i32
    %c0_i32_0 = arith.constant 0 : i32
    return %c0_i32, %arg0 : i32, i32
  }
}

</mosaic_0001>

<llo_original>
// kernel: tpu_custom_call.1
$region0: #{tpu_custom_call.1}
  #allocation0 [shape = 'u32[]', space=smem, size = 0x4, offset = 0x4, fixed_abs, tag = 'smem constant byte address 0x4 - core index']
  #allocation1 [shape = 'u32[144,128]{1,0:T(1,128)}', space=vmem, size = 0x12000, scoped, tag = 'internal scratch']
  %s0 = inlined_call_operand.hbm [shape: bf16[512,128], index: 0, kind: input, shape index: {}]
  %s1 = inlined_call_operand.hbm [shape: bf16[128,128], index: 1, kind: input, shape index: {}]
  %s2 = inlined_call_operand.hbm [shape: f32[512,128], index: 2, kind: output, shape index: {0}]
  %s3 = inlined_call_operand.hbm [shape: f32[1,256], index: 3, kind: output, shape index: {1}]
  %s4 = inlined_call_operand.hbm [shape: f32[1,256], index: 4, kind: output, shape index: {2}]
  %5 = xla_tuple %s2, %s3, %s4
  %s6 = sld [smem:[#allocation0]]
  $region69: #{tpu_custom_call.1} parent=0
    _
  %s8 = ssub.s32 1, %s6
  %s9 = scalar_select 0, %s8, %s6
  $region1: #{tpu_custom_call.1} parent=0
    #allocation2 [shape = 'u8[65536]{0}', space=vmem, size = 0x10000, scoped, tag = 'input window, operand 0']
    #allocation3 [shape = 's32[2]{0}', space=sflag, size = 0x8, scoped, tag = 'scoped memory for tpu_custom_call.1']
    #allocation4 [shape = 's32[2]{0}', space=sflag, size = 0x8, scoped, tag = 'scoped memory for tpu_custom_call.1']
    #allocation5 [shape = 'u8[32768]{0}', space=vmem, size = 0x8000, scoped, tag = 'input window, operand 1, single buffered']
    #allocation6 [shape = 's32[1]{0}', space=sflag, size = 0x4, scoped, tag = 'scoped memory for tpu_custom_call.1']
    #allocation7 [shape = 'u8[131072]{0}', space=vmem, size = 0x20000, scoped, tag = 'output window, operand 0']
    #allocation8 [shape = 'u8[1024]{0}', space=vmem, size = 0x400, scoped, tag = 'output window, operand 1']
    #allocation9 [shape = 's32[2]{0}', space=sflag, size = 0x8, scoped, tag = 'scoped memory for tpu_custom_call.1']
    #allocation10 [shape = 'u8[1024]{0}', space=vmem, size = 0x400, scoped, tag = 'output window, operand 2']
    %10 = vsyncpa [#allocation3], 0
    %s11 = scalar_lea.sflag [#allocation3], 1
    %12 = vsyncpa %s11, 0
    %13 = vsyncpa [#allocation6], 0
    %14 = vsyncpa [#allocation4], 0
    %s15 = scalar_lea.sflag [#allocation4], 1
    %16 = vsyncpa %s15, 0
    %17 = vsyncpa [#allocation9], 0
    %s18 = scalar_lea.sflag [#allocation9], 1
    %19 = vsyncpa %s18, 0
    loop: start=0, step=1, limit=6
    $region2: #{tpu_custom_call.1} parent=1 // loop_pre_header
      _
    $region3: #{tpu_custom_call.1} parent=1 // loop_header
      %s21 = sphi 0, %s25
      %p22 = scmp.ge.s32.totalorder %s21, 6
      %s28 = sphi 0, %s40
      %s29 = sphi 0, %s36
      %s30 = sphi 0, %s28
      %s31 = sphi 0, %s29
      %s32 = sphi 0, %s30
      %s33 = sphi 0, %s31
      %s47 = sphi 0, %s49
      %s50 = sphi 0, %s47
      %s51 = sphi 0, %s50
      %s67 = sphi 0, %s51
      %s71 = sphi 0, %s71
      %s73 = sphi 0, %s71
      %s74 = sphi 0, %s73
      %s88 = sphi 0, %s74
      %s98 = sphi 0, %s100
      %s101 = sphi 0, %s98
      %s102 = sphi 0, %s101
      %s118 = sphi 0, %s102
      %s124 = sphi 0, %s126
      %s127 = sphi 0, %s124
      %s128 = sphi 0, %s127
      %s144 = sphi 0, %s128
      %s150 = sphi 0, %s152
      %s153 = sphi 0, %s150
      %s154 = sphi 0, %s153
      %s170 = sphi 0, %s154
    $region4: #{tpu_custom_call.1} parent=1 // loop_header_branch
      %24 = sbr.rel (%p22) target = $region8
    $region5: #{tpu_custom_call.1} parent=1 // loop_body
      %s26 = ssub.s32 %s21, 1
      %s27 = ssub.s32 %s21, 2
      %s34 = sadd.s32 1, %s29
      %p35 = scmp.ge.s32.totalorder %s34, 2
      %s36 = scalar_select %p35, 0, %s34
      %s37 = sadd.s32 1, %s28
      %s38 = scalar_select %p35, %s37, %s28
      %p39 = scmp.ge.s32.totalorder %s38, 2
      %s40 = scalar_select %p39, 0, %s38
      %s41 = smul.u32 %s28, 2
      %s42 = sadd.s32 %s41, %s29
      %s43 = smul.u32 %s40, 2
      %s44 = sadd.s32 %s43, %s36
      %s45 = ssub.s32 %s42, %s44
      %p46 = scmp.eq.s32.totalorder %s45, 0
      %s48 = sadd.s32 %s47, 1
      %s49 = scalar_select %p46, %s47, %s48
      %p52 = pneg %p46
      %p53 = scmp.eq.s32.totalorder %s21, 3
      %p54 = por %p52, %p53
      %p55 = scmp.ne.s32.totalorder %s47, %s50
      %p56 = scmp.eq.s32.totalorder %s21, 0
      %p57 = por %p55, %p56
      %p58 = scmp.ne.s32.totalorder %s47, %s50
      %p59 = scmp.eq.s32.totalorder %s26, 3
      %p60 = por %p58, %p59
      %p61 = scmp.ne.s32.totalorder %s50, %s51
      %p62 = scmp.eq.s32.totalorder %s26, 0
      %p63 = por %p61, %p62
      %p64 = scmp.ne.s32.totalorder %s50, %s51
      %p65 = scmp.eq.s32.totalorder %s27, 3
      %p66 = por %p64, %p65
      %p68 = scmp.ne.s32.totalorder %s51, %s67
      %p69 = scmp.eq.s32.totalorder %s27, 0
      %p70 = por %p68, %p69
      %s72 = sadd.s32 %s71, 1
      %p75 = scmp.eq.s32.totalorder %s21, 3
      %p76 = scmp.ne.s32.totalorder %s71, %s73
      %p77 = scmp.eq.s32.totalorder %s21, 0
      %p78 = por %p76, %p77
      %p79 = scmp.ne.s32.totalorder %s71, %s73
      %p80 = scmp.eq.s32.totalorder %s26, 3
      %p81 = por %p79, %p80
      %p82 = scmp.ne.s32.totalorder %s73, %s74
      %p83 = scmp.eq.s32.totalorder %s26, 0
      %p84 = por %p82, %p83
      %p85 = scmp.ne.s32.totalorder %s73, %s74
      %p86 = scmp.eq.s32.totalorder %s27, 3
      %p87 = por %p85, %p86
      %p89 = scmp.ne.s32.totalorder %s74, %s88
      %p90 = scmp.eq.s32.totalorder %s27, 0
      %p91 = por %p89, %p90
      %s92 = smul.u32 %s28, 2
      %s93 = sadd.s32 %s92, %s29
      %s94 = smul.u32 %s40, 2
      %s95 = sadd.s32 %s94, %s36
      %s96 = ssub.s32 %s93, %s95
      %p97 = scmp.eq.s32.totalorder %s96, 0
      %s99 = sadd.s32 %s98, 1
      %s100 = scalar_select %p97, %s98, %s99
      %p103 = pneg %p97
      %p104 = scmp.eq.s32.totalorder %s21, 3
      %p105 = por %p103, %p104
      %p106 = scmp.ne.s32.totalorder %s98, %s101
      %p107 = scmp.eq.s32.totalorder %s21, 0
      %p108 = por %p106, %p107
      %p109 = scmp.ne.s32.totalorder %s98, %s101
      %p110 = scmp.eq.s32.totalorder %s26, 3
      %p111 = por %p109, %p110
      %p112 = scmp.ne.s32.totalorder %s101, %s102
      %p113 = scmp.eq.s32.totalorder %s26, 0
      %p114 = por %p112, %p113
      %p115 = scmp.ne.s32.totalorder %s101, %s102
      %p116 = scmp.eq.s32.totalorder %s27, 3
      %p117 = por %p115, %p116
      %p119 = scmp.ne.s32.totalorder %s102, %s118
      %p120 = scmp.eq.s32.totalorder %s27, 0
      %p121 = por %p119, %p120
      %s122 = ssub.s32 %s28, %s40
      %p123 = scmp.eq.s32.totalorder %s122, 0
      %s125 = sadd.s32 %s124, 1
      %s126 = scalar_select %p123, %s124, %s125
      %p129 = pneg %p123
      %p130 = scmp.eq.s32.totalorder %s21, 3
      %p131 = por %p129, %p130
      %p132 = scmp.ne.s32.totalorder %s124, %s127
      %p133 = scmp.eq.s32.totalorder %s21, 0
      %p134 = por %p132, %p133
      %p135 = scmp.ne.s32.totalorder %s124, %s127
      %p136 = scmp.eq.s32.totalorder %s26, 3
      %p137 = por %p135, %p136
      %p138 = scmp.ne.s32.totalorder %s127, %s128
      %p139 = scmp.eq.s32.totalorder %s26, 0
      %p140 = por %p138, %p139
      %p141 = scmp.ne.s32.totalorder %s127, %s128
      %p142 = scmp.eq.s32.totalorder %s27, 3
      %p143 = por %p141, %p142
      %p145 = scmp.ne.s32.totalorder %s128, %s144
      %p146 = scmp.eq.s32.totalorder %s27, 0
      %p147 = por %p145, %p146
      %s148 = ssub.s32 %s28, %s40
      %p149 = scmp.eq.s32.totalorder %s148, 0
      %s151 = sadd.s32 %s150, 1
      %s152 = scalar_select %p149, %s150, %s151
      %p155 = pneg %p149
      %p156 = scmp.eq.s32.totalorder %s21, 3
      %p157 = por %p155, %p156
      %p158 = scmp.ne.s32.totalorder %s150, %s153
      %p159 = scmp.eq.s32.totalorder %s21, 0
      %p160 = por %p158, %p159
      %p161 = scmp.ne.s32.totalorder %s150, %s153
      %p162 = scmp.eq.s32.totalorder %s26, 3
      %p163 = por %p161, %p162
      %p164 = scmp.ne.s32.totalorder %s153, %s154
      %p165 = scmp.eq.s32.totalorder %s26, 0
      %p166 = por %p164, %p165
      %p167 = scmp.ne.s32.totalorder %s153, %s154
      %p168 = scmp.eq.s32.totalorder %s27, 3
      %p169 = por %p167, %p168
      %p171 = scmp.ne.s32.totalorder %s154, %s170
      %p172 = scmp.eq.s32.totalorder %s27, 0
      %p173 = por %p171, %p172
      %p174 = scmp.le.s32.totalorder 1, %s21
      %p175 = scmp.lt.s32.totalorder %s21, 5
      %p176 = pnand %p174, %p175
      %p177 = pneg %p176
      // Predicated region
      $region9: #{tpu_custom_call.1} parent=5 // pred_check
        _
      $region10: #{tpu_custom_call.1} parent=5 // pred_check_branch
        %179 = sbr.rel (%p176) target = $region12
      $region11: #{tpu_custom_call.1} parent=5 // pred_region
        %s180 = ssub.s32 %s21, 1
        // Predicated region
        $region13: #{tpu_custom_call.1} parent=11 // pred_check
          %p181 = pneg %p84
        $region14: #{tpu_custom_call.1} parent=11 // pred_check_branch
          %183 = sbr.rel (%p181) target = $region16
        $region15: #{tpu_custom_call.1} parent=11 // pred_region
          %s185 = ssub.s32 1024, 1024
          %186 = vsyncadd [#allocation6], %s185
          %s187 = sshll.u32 [#allocation5], 4
          %s188 = int_to_ptr.vmem [resolvable:$true] %s187
          %193 = dma.hbm_to_vmem [thread:$0]  %s1, 1024, %s188, [#allocation6], 64, 64, 4
        $region16: #{tpu_custom_call.1} parent=11 // pred_fallthru
          _
      $region12: #{tpu_custom_call.1} parent=5 // pred_fallthru
        _
      %p194 = scmp.lt.s32.totalorder %s21, 4
      // Predicated region
      $region17: #{tpu_custom_call.1} parent=5 // pred_check
        %p195 = pneg %p194
      $region18: #{tpu_custom_call.1} parent=5 // pred_check_branch
        %197 = sbr.rel (%p195) target = $region20
      $region19: #{tpu_custom_call.1} parent=5 // pred_region
        // Predicated region
        $region21: #{tpu_custom_call.1} parent=19 // pred_check
          %p198 = pneg %p57
        $region22: #{tpu_custom_call.1} parent=19 // pred_check_branch
          %200 = sbr.rel (%p198) target = $region24
        $region23: #{tpu_custom_call.1} parent=19 // pred_region
          %s201 = sand.u32 %s47, 1
          %s202 = scalar_lea.sflag [#allocation3], %s201
          %s203 = sand.u32 %s47, 1
          %s204 = smul.addr %s203, 64
          %s205 = scalar_lea.vmem [#allocation2], %s204
          %s206 = smul.u32 %s28, 2
          %s207 = sadd.s32 %s206, %s29
          %s208 = smul.u32 16, %s207
          %s210 = ssub.s32 1024, 1024
          %211 = vsyncadd %s202, %s210
          %s212 = smul.addr %s208, 64
          %s213 = scalar_lea.hbm %s0, %s212
          %s214 = sshll.u32 %s205, 4
          %s215 = int_to_ptr.vmem [resolvable:$true] %s214
          %220 = dma.hbm_to_vmem [thread:$0]  %s213, 1024, %s215, %s202, 64, 64, 4
        $region24: #{tpu_custom_call.1} parent=19 // pred_fallthru
          _
      $region20: #{tpu_custom_call.1} parent=5 // pred_fallthru
        _
      %p221 = scmp.le.s32.totalorder 1, %s21
      %p222 = scmp.lt.s32.totalorder %s21, 5
      %p223 = pnand %p221, %p222
      %p224 = pneg %p223
      // Predicated region
      $region25: #{tpu_custom_call.1} parent=5 // pred_check
        _
      $region26: #{tpu_custom_call.1} parent=5 // pred_check_branch
        %226 = sbr.rel (%p223) target = $region28
      $region27: #{tpu_custom_call.1} parent=5 // pred_region
        %s227 = ssub.s32 %s21, 1
        %s228 = sand.u32 %s50, 1
        %s229 = scalar_lea.sflag [#allocation3], %s228
        %s230 = sand.u32 %s50, 1
        %s231 = smul.addr %s230, 64
        %s232 = scalar_lea.vmem [#allocation2], %s231
        // Predicated region
        $region29: #{tpu_custom_call.1} parent=27 // pred_check
          %p233 = pneg %p63
        $region30: #{tpu_custom_call.1} parent=27 // pred_check_branch
          %235 = sbr.rel (%p233) target = $region32
        $region31: #{tpu_custom_call.1} parent=27 // pred_region
          %236 = dma.done %s229, 1024
        $region32: #{tpu_custom_call.1} parent=27 // pred_fallthru
          _
        // Predicated region
        $region33: #{tpu_custom_call.1} parent=27 // pred_check
          %p237 = pneg %p84
        $region34: #{tpu_custom_call.1} parent=27 // pred_check_branch
          %239 = sbr.rel (%p237) target = $region36
        $region35: #{tpu_custom_call.1} parent=27 // pred_region
          %240 = dma.done [#allocation6], 1024
        $region36: #{tpu_custom_call.1} parent=27 // pred_fallthru
          _
        %s241 = sand.u32 %s50, 1
        %s242 = scalar_lea.sflag [#allocation3], %s241
        %s243 = sand.u32 %s50, 1
        %s244 = smul.addr %s243, 64
        %s245 = scalar_lea.vmem [#allocation2], %s244
        %p246 = pneg %p63
        %p247 = pneg %p60
        %p248 = pneg %p84
        %p249 = pneg %p81
        %p250 = pneg %p114
        %p251 = pneg %p111
        %s252 = sand.u32 %s101, 1
        %s253 = scalar_lea.sflag [#allocation4], %s252
        %s254 = sand.u32 %s101, 1
        %s255 = smul.addr %s254, 128
        %s256 = scalar_lea.vmem [#allocation7], %s255
        %p257 = pneg %p140
        %p258 = pneg %p137
        %s259 = sand.u32 %s26, 1
        %s260 = scalar_lea.sflag [#allocation9], %s259
        %s261 = sand.u32 %s127, 1
        %s262 = scalar_lea.vmem [#allocation8], %s261
        %p263 = pneg %p166
        %p264 = pneg %p163
        %s265 = sand.u32 %s26, 1
        %s266 = scalar_lea.sflag [#allocation9], %s265
        %s267 = sand.u32 %s153, 1
        %s268 = scalar_lea.vmem [#allocation10], %s267
        %s269 = smul.u32 %s30, 2
        %s270 = sadd.s32 %s269, %s31
        %s271 = smul.u32 16, %s270
        %s272 = smul.u32 %s30, 2
        %s273 = sadd.s32 %s272, %s31
        %s274 = smul.u32 16, %s273
        %v276 = vld [vmem:[%s232] sm:$0xf]
        %v277 = vld [vmem:[%s232 + $0x4] sm:$0xf]
        %v278 = vld [vmem:[%s232 + $0x8] sm:$0xf]
        %v279 = vld [vmem:[%s232 + $0xc] sm:$0xf]
        %v280 = vld [vmem:[%s232 + $0x10] sm:$0xf]
        %v281 = vld [vmem:[%s232 + $0x14] sm:$0xf]
        %v282 = vld [vmem:[%s232 + $0x18] sm:$0xf]
        %v283 = vld [vmem:[%s232 + $0x1c] sm:$0xf]
        %v284 = vld [vmem:[%s232 + $0x20] sm:$0xf]
        %v285 = vld [vmem:[%s232 + $0x24] sm:$0xf]
        %v286 = vld [vmem:[%s232 + $0x28] sm:$0xf]
        %v287 = vld [vmem:[%s232 + $0x2c] sm:$0xf]
        %v288 = vld [vmem:[%s232 + $0x30] sm:$0xf]
        %v289 = vld [vmem:[%s232 + $0x34] sm:$0xf]
        %v290 = vld [vmem:[%s232 + $0x38] sm:$0xf]
        %v291 = vld [vmem:[%s232 + $0x3c] sm:$0xf]
        %v292 = vld [vmem:[#allocation5] sm:$0xf]
        %v293 = vld [vmem:[#allocation5 + $0x4] sm:$0xf]
        %v294 = vld [vmem:[#allocation5 + $0x8] sm:$0xf]
        %v295 = vld [vmem:[#allocation5 + $0xc] sm:$0xf]
        %v296 = vld [vmem:[#allocation5 + $0x10] sm:$0xf]
        %v297 = vld [vmem:[#allocation5 + $0x14] sm:$0xf]
        %v298 = vld [vmem:[#allocation5 + $0x18] sm:$0xf]
        %v299 = vld [vmem:[#allocation5 + $0x1c] sm:$0xf]
        %v300 = vld [vmem:[#allocation5 + $0x20] sm:$0xf]
        %v301 = vld [vmem:[#allocation5 + $0x24] sm:$0xf]
        %v302 = vld [vmem:[#allocation5 + $0x28] sm:$0xf]
        %v303 = vld [vmem:[#allocation5 + $0x2c] sm:$0xf]
        %v304 = vld [vmem:[#allocation5 + $0x30] sm:$0xf]
        %v305 = vld [vmem:[#allocation5 + $0x34] sm:$0xf]
        %v306 = vld [vmem:[#allocation5 + $0x38] sm:$0xf]
        %v307 = vld [vmem:[#allocation5 + $0x3c] sm:$0xf]
        %v324 = vunpack.c.l.b16 %v276
        %v325 = vunpack.c.l.b16 %v277
        %v326 = vunpack.c.l.b16 %v278
        %v327 = vunpack.c.l.b16 %v279
        %v328 = vunpack.c.l.b16 %v280
        %v329 = vunpack.c.l.b16 %v281
        %v330 = vunpack.c.l.b16 %v282
        %v331 = vunpack.c.l.b16 %v283
        %v332 = vunpack.c.l.b16 %v284
        %v333 = vunpack.c.l.b16 %v285
        %v334 = vunpack.c.l.b16 %v286
        %v335 = vunpack.c.l.b16 %v287
        %v336 = vunpack.c.l.b16 %v288
        %v337 = vunpack.c.l.b16 %v289
        %v338 = vunpack.c.l.b16 %v290
        %v339 = vunpack.c.l.b16 %v291
        %v340 = vpack.c.b16 %v325, %v324
        %v341 = vpack.c.b16 %v327, %v326
        %v342 = vpack.c.b16 %v329, %v328
        %v343 = vpack.c.b16 %v331, %v330
        %v344 = vpack.c.b16 %v333, %v332
        %v345 = vpack.c.b16 %v335, %v334
        %v346 = vpack.c.b16 %v337, %v336
        %v347 = vpack.c.b16 %v339, %v338
        %v372 = vunpack.c.l.b16 %v292
        %v373 = vunpack.c.l.b16 %v293
        %v374 = vunpack.c.l.b16 %v294
        %v375 = vunpack.c.l.b16 %v295
        %v376 = vunpack.c.l.b16 %v296
        %v377 = vunpack.c.l.b16 %v297
        %v378 = vunpack.c.l.b16 %v298
        %v379 = vunpack.c.l.b16 %v299
        %v380 = vunpack.c.l.b16 %v300
        %v381 = vunpack.c.l.b16 %v301
        %v382 = vunpack.c.l.b16 %v302
        %v383 = vunpack.c.l.b16 %v303
        %v384 = vunpack.c.l.b16 %v304
        %v385 = vunpack.c.l.b16 %v305
        %v386 = vunpack.c.l.b16 %v306
        %v387 = vunpack.c.l.b16 %v307
        %v388 = vpack.c.b16 %v373, %v372
        %v389 = vpack.c.b16 %v375, %v374
        %v390 = vpack.c.b16 %v377, %v376
        %v391 = vpack.c.b16 %v379, %v378
        %v392 = vpack.c.b16 %v381, %v380
        %v393 = vpack.c.b16 %v383, %v382
        %v394 = vpack.c.b16 %v385, %v384
        %v395 = vpack.c.b16 %v387, %v386
        %404 = vmatprep.subr.bf16.mxu0 0
        %405 = vmatpush1.bf16.msra.mxu0 %v388
        %406 = vmatprep.subr.bf16.mxu0 0
        %407 = vmatpush1.bf16.msra.mxu0 %v389
        %408 = vmatprep.subr.bf16.mxu0 0
        %409 = vmatpush1.bf16.msra.mxu0 %v390
        %410 = vmatprep.subr.bf16.mxu0 0
        %411 = vmatpush1.bf16.msra.mxu0 %v391
        %412 = vmatprep.subr.bf16.mxu0 0
        %413 = vmatpush1.bf16.msra.mxu0 %v392
        %414 = vmatprep.subr.bf16.mxu0 0
        %415 = vmatpush1.bf16.msra.mxu0 %v393
        %416 = vmatprep.subr.bf16.mxu0 0
        %417 = vmatpush1.bf16.msra.mxu0 %v394
        %418 = vmatprep.subr.bf16.mxu0 0
        %419 = vmatpush1.bf16.msra.mxu0 %v395
        %420 = vmatprep.subr.bf16.mxu0 0
        %421 = vmatpush1.bf16.msra.mxu0 0
        %422 = vmatprep.subr.bf16.mxu0 0
        %423 = vmatpush1.bf16.msra.mxu0 0
        %424 = vmatprep.subr.bf16.mxu0 0
        %425 = vmatpush1.bf16.msra.mxu0 0
        %426 = vmatprep.subr.bf16.mxu0 0
        %427 = vmatpush1.bf16.msra.mxu0 0
        %428 = vmatprep.subr.bf16.mxu0 0
        %429 = vmatpush1.bf16.msra.mxu0 0
        %430 = vmatprep.subr.bf16.mxu0 0
        %431 = vmatpush1.bf16.msra.mxu0 0
        %432 = vmatprep.subr.bf16.mxu0 0
        %433 = vmatpush1.bf16.msra.mxu0 0
        %434 = vmatprep.subr.bf16.mxu0 0
        %435 = vmatpush1.bf16.msra.mxu0 0
        %436 = vmatprep.mubr.bf16.mxu0 0
        %437 = vmatmul.mubr.bf16.gmra.mrb[0].mxu0 %v340
        %v438 = vpop.f32.mrb[0].mxu0
        %v439 = vadd.f32 0.0, %v438
        %v440 = vpop.f32.mrb[0].mxu0
        %v441 = vpop.f32.mrb[0].mxu0
        %v442 = vadd.f32 0.0, %v441
        %v443 = vpop.f32.mrb[0].mxu0
        %444 = vmatprep.mubr.bf16.mxu0 0
        %445 = vmatmul.mubr.bf16.gmra.mrb[0].mxu0 %v341
        %v446 = vpop.f32.mrb[0].mxu0
        %v447 = vadd.f32 0.0, %v446
        %v448 = vpop.f32.mrb[0].mxu0
        %v449 = vpop.f32.mrb[0].mxu0
        %v450 = vadd.f32 0.0, %v449
        %v451 = vpop.f32.mrb[0].mxu0
        %452 = vmatprep.mubr.bf16.mxu0 0
        %453 = vmatmul.mubr.bf16.gmra.mrb[0].mxu0 %v342
        %v454 = vpop.f32.mrb[0].mxu0
        %v455 = vadd.f32 0.0, %v454
        %v456 = vpop.f32.mrb[0].mxu0
        %v457 = vpop.f32.mrb[0].mxu0
        %v458 = vadd.f32 0.0, %v457
        %v459 = vpop.f32.mrb[0].mxu0
        %460 = vmatprep.mubr.bf16.mxu0 0
        %461 = vmatmul.mubr.bf16.gmra.mrb[0].mxu0 %v343
        %v462 = vpop.f32.mrb[0].mxu0
        %v463 = vadd.f32 0.0, %v462
        %v464 = vpop.f32.mrb[0].mxu0
        %v465 = vpop.f32.mrb[0].mxu0
        %v466 = vadd.f32 0.0, %v465
        %v467 = vpop.f32.mrb[0].mxu0
        %468 = vmatprep.mubr.bf16.mxu0 0
        %469 = vmatmul.mubr.bf16.gmra.mrb[0].mxu0 %v344
        %v470 = vpop.f32.mrb[0].mxu0
        %v471 = vadd.f32 0.0, %v470
        %v472 = vpop.f32.mrb[0].mxu0
        %v473 = vpop.f32.mrb[0].mxu0
        %v474 = vadd.f32 0.0, %v473
        %v475 = vpop.f32.mrb[0].mxu0
        %476 = vmatprep.mubr.bf16.mxu0 0
        %477 = vmatmul.mubr.bf16.gmra.mrb[0].mxu0 %v345
        %v478 = vpop.f32.mrb[0].mxu0
        %v479 = vadd.f32 0.0, %v478
        %v480 = vpop.f32.mrb[0].mxu0
        %v481 = vpop.f32.mrb[0].mxu0
        %v482 = vadd.f32 0.0, %v481
        %v483 = vpop.f32.mrb[0].mxu0
        %484 = vmatprep.mubr.bf16.mxu0 0
        %485 = vmatmul.mubr.bf16.gmra.mrb[0].mxu0 %v346
        %v486 = vpop.f32.mrb[0].mxu0
        %v487 = vadd.f32 0.0, %v486
        %v488 = vpop.f32.mrb[0].mxu0
        %v489 = vpop.f32.mrb[0].mxu0
        %v490 = vadd.f32 0.0, %v489
        %v491 = vpop.f32.mrb[0].mxu0
        %492 = vmatprep.mubr.bf16.mxu0 0
        %493 = vmatmul.mubr.bf16.gmra.mrb[0].mxu0 %v347
        %v494 = vpop.f32.mrb[0].mxu0
        %v495 = vadd.f32 0.0, %v494
        %v496 = vpop.f32.mrb[0].mxu0
        %v497 = vpop.f32.mrb[0].mxu0
        %v498 = vadd.f32 0.0, %v497
        %v499 = vpop.f32.mrb[0].mxu0
        %500 = vdwg.mxu0
        %501 = vst [vmem:[%s256] sm:$0xff] %v439
        %502 = vst [vmem:[%s256 + $0x8] sm:$0xff] %v442
        %503 = vst [vmem:[%s256 + $0x10] sm:$0xff] %v447
        %504 = vst [vmem:[%s256 + $0x18] sm:$0xff] %v450
        %505 = vst [vmem:[%s256 + $0x20] sm:$0xff] %v455
        %506 = vst [vmem:[%s256 + $0x28] sm:$0xff] %v458
        %507 = vst [vmem:[%s256 + $0x30] sm:$0xff] %v463
        %508 = vst [vmem:[%s256 + $0x38] sm:$0xff] %v466
        %509 = vst [vmem:[%s256 + $0x40] sm:$0xff] %v471
        %510 = vst [vmem:[%s256 + $0x48] sm:$0xff] %v474
        %511 = vst [vmem:[%s256 + $0x50] sm:$0xff] %v479
        %512 = vst [vmem:[%s256 + $0x58] sm:$0xff] %v482
        %513 = vst [vmem:[%s256 + $0x60] sm:$0xff] %v487
        %514 = vst [vmem:[%s256 + $0x68] sm:$0xff] %v490
        %515 = vst [vmem:[%s256 + $0x70] sm:$0xff] %v495
        %516 = vst [vmem:[%s256 + $0x78] sm:$0xff] %v498
        %p517 = scmp.eq.s32.totalorder %s31, 0
        // Predicated region
        $region37: #{tpu_custom_call.1} parent=27 // pred_check
          %p518 = pneg %p517
        $region38: #{tpu_custom_call.1} parent=27 // pred_check_branch
          %520 = sbr.rel (%p518) target = $region40
        $region39: #{tpu_custom_call.1} parent=27 // pred_region
          %521 = vst [vmem:[%s262] sm:$0x1] 0.0
          %522 = vst [vmem:[%s268] sm:$0x1] 0.0
        $region40: #{tpu_custom_call.1} parent=27 // pred_fallthru
          _
        %v523 = vld [vmem:[%s262] sm:$0x1]
        %v524 = vadd.f32 %v439, %v442
        %v525 = vadd.f32 %v524, %v447
        %v526 = vadd.f32 %v525, %v450
        %v527 = vadd.f32 %v526, %v455
        %v528 = vadd.f32 %v527, %v458
        %v529 = vadd.f32 %v528, %v463
        %v530 = vadd.f32 %v529, %v466
        %v531 = vadd.f32 %v530, %v471
        %v532 = vadd.f32 %v531, %v474
        %v533 = vadd.f32 %v532, %v479
        %v534 = vadd.f32 %v533, %v482
        %v535 = vadd.f32 %v534, %v487
        %v536 = vadd.f32 %v535, %v490
        %v537 = vadd.f32 %v536, %v495
        %v538 = vadd.f32 %v537, %v498
        %v539 = vrot.slane %v538, 4
        %v540 = vadd.f32 %v538, %v539
        %v541 = vrot.slane %v540, 2
        %v542 = vadd.f32 %v540, %v541
        %v543 = vrot.slane %v542, 1
        %v544 = vadd.f32 %v542, %v543
        %v545 = vadd.f32 %v523, %v544
        %546 = vst [vmem:[%s262] sm:$0x1] %v545
        %v547 = vld [vmem:[%s268] sm:$0x1]
        %v548 = vmul.f32 %v439, %v439
        %v549 = vmul.f32 %v442, %v442
        %v550 = vmul.f32 %v447, %v447
        %v551 = vmul.f32 %v450, %v450
        %v552 = vmul.f32 %v455, %v455
        %v553 = vmul.f32 %v458, %v458
        %v554 = vmul.f32 %v463, %v463
        %v555 = vmul.f32 %v466, %v466
        %v556 = vmul.f32 %v471, %v471
        %v557 = vmul.f32 %v474, %v474
        %v558 = vmul.f32 %v479, %v479
        %v559 = vmul.f32 %v482, %v482
        %v560 = vmul.f32 %v487, %v487
        %v561 = vmul.f32 %v490, %v490
        %v562 = vmul.f32 %v495, %v495
        %v563 = vmul.f32 %v498, %v498
        %v564 = vadd.f32 %v548, %v549
        %v565 = vadd.f32 %v564, %v550
        %v566 = vadd.f32 %v565, %v551
        %v567 = vadd.f32 %v566, %v552
        %v568 = vadd.f32 %v567, %v553
        %v569 = vadd.f32 %v568, %v554
        %v570 = vadd.f32 %v569, %v555
        %v571 = vadd.f32 %v570, %v556
        %v572 = vadd.f32 %v571, %v557
        %v573 = vadd.f32 %v572, %v558
        %v574 = vadd.f32 %v573, %v559
        %v575 = vadd.f32 %v574, %v560
        %v576 = vadd.f32 %v575, %v561
        %v577 = vadd.f32 %v576, %v562
        %v578 = vadd.f32 %v577, %v563
        %v579 = vrot.slane %v578, 4
        %v580 = vadd.f32 %v578, %v579
        %v581 = vrot.slane %v580, 2
        %v582 = vadd.f32 %v580, %v581
        %v583 = vrot.slane %v582, 1
        %v584 = vadd.f32 %v582, %v583
        %v585 = vadd.f32 %v547, %v584
        %586 = vst [vmem:[%s268] sm:$0x1] %v585
        %s587 = sand.u32 %s101, 1
        %s588 = scalar_lea.sflag [#allocation4], %s587
        %s589 = sand.u32 %s101, 1
        %s590 = smul.addr %s589, 128
        %s591 = scalar_lea.vmem [#allocation7], %s590
        %s592 = sand.u32 %s26, 1
        %s593 = scalar_lea.sflag [#allocation9], %s592
        %s594 = sand.u32 %s127, 1
        %s595 = scalar_lea.vmem [#allocation8], %s594
        %s596 = sand.u32 %s26, 1
        %s597 = scalar_lea.sflag [#allocation9], %s596
        %s598 = sand.u32 %s153, 1
        %s599 = scalar_lea.vmem [#allocation10], %s598
        // Predicated region
        $region41: #{tpu_custom_call.1} parent=27 // pred_check
          %p600 = pneg %p111
        $region42: #{tpu_custom_call.1} parent=27 // pred_check_branch
          %602 = sbr.rel (%p600) target = $region44
        $region43: #{tpu_custom_call.1} parent=27 // pred_region
          %s603 = smul.u32 %s30, 2
          %s604 = sadd.s32 %s603, %s31
          %s605 = smul.u32 16, %s604
          %s607 = ssub.s32 2048, 2048
          %608 = vsyncadd %s588, %s607
          %s609 = smul.addr %s605, 128
          %s610 = scalar_lea.hbm %s2, %s609
          %s611 = sshll.u32 %s591, 4
          %s612 = int_to_ptr.vmem [resolvable:$true] %s611
          %617 = dma.vmem_to_hbm [thread:$0]  %s612, 2048, %s610, %s588, 128, 128, 8
        $region44: #{tpu_custom_call.1} parent=27 // pred_fallthru
          _
        // Predicated region
        $region45: #{tpu_custom_call.1} parent=27 // pred_check
          %p618 = pneg %p137
        $region46: #{tpu_custom_call.1} parent=27 // pred_check_branch
          %620 = sbr.rel (%p618) target = $region48
        $region47: #{tpu_custom_call.1} parent=27 // pred_region
          %s622 = ssub.s32 16, 16
          %623 = vsyncadd %s593, %s622
          %s624 = smul.addr %s30, 16
          %s625 = scalar_lea.hbm %s3, %s624
          %s627 = sshll.u32 %s595, 4
          %s628 = int_to_ptr.vmem [resolvable:$true] %s627
          %630 = dma.vmem_to_hbm [thread:$0]  %s628, 16, %s625, %s593
        $region48: #{tpu_custom_call.1} parent=27 // pred_fallthru
          _
        // Predicated region
        $region49: #{tpu_custom_call.1} parent=27 // pred_check
          %p631 = pneg %p163
        $region50: #{tpu_custom_call.1} parent=27 // pred_check_branch
          %633 = sbr.rel (%p631) target = $region52
        $region51: #{tpu_custom_call.1} parent=27 // pred_region
          %s635 = ssub.s32 16, 16
          %636 = vsyncadd %s597, %s635
          %s637 = smul.addr %s30, 16
          %s638 = scalar_lea.hbm %s4, %s637
          %s640 = sshll.u32 %s599, 4
          %s641 = int_to_ptr.vmem [resolvable:$true] %s640
          %643 = dma.vmem_to_hbm [thread:$0]  %s641, 16, %s638, %s597
        $region52: #{tpu_custom_call.1} parent=27 // pred_fallthru
          _
      $region28: #{tpu_custom_call.1} parent=5 // pred_fallthru
        _
      %p644 = scmp.le.s32.totalorder 2, %s21
      // Predicated region
      $region53: #{tpu_custom_call.1} parent=5 // pred_check
        %p645 = pneg %p644
      $region54: #{tpu_custom_call.1} parent=5 // pred_check_branch
        %647 = sbr.rel (%p645) target = $region56
      $region55: #{tpu_custom_call.1} parent=5 // pred_region
        %s648 = ssub.s32 %s21, 2
        // Predicated region
        $region57: #{tpu_custom_call.1} parent=55 // pred_check
          %p649 = pneg %p117
        $region58: #{tpu_custom_call.1} parent=55 // pred_check_branch
          %651 = sbr.rel (%p649) target = $region60
        $region59: #{tpu_custom_call.1} parent=55 // pred_region
          %s652 = sand.u32 %s102, 1
          %s653 = scalar_lea.sflag [#allocation4], %s652
          %s654 = sand.u32 %s102, 1
          %s655 = smul.addr %s654, 128
          %s656 = scalar_lea.vmem [#allocation7], %s655
          %657 = dma.done %s653, 2048
        $region60: #{tpu_custom_call.1} parent=55 // pred_fallthru
          _
        // Predicated region
        $region61: #{tpu_custom_call.1} parent=55 // pred_check
          %p658 = pneg %p143
        $region62: #{tpu_custom_call.1} parent=55 // pred_check_branch
          %660 = sbr.rel (%p658) target = $region64
        $region63: #{tpu_custom_call.1} parent=55 // pred_region
          %s661 = sand.u32 %s27, 1
          %s662 = scalar_lea.sflag [#allocation9], %s661
          %s663 = sand.u32 %s128, 1
          %s664 = scalar_lea.vmem [#allocation8], %s663
          %665 = dma.done %s662, 16
        $region64: #{tpu_custom_call.1} parent=55 // pred_fallthru
          _
        // Predicated region
        $region65: #{tpu_custom_call.1} parent=55 // pred_check
          %p666 = pneg %p169
        $region66: #{tpu_custom_call.1} parent=55 // pred_check_branch
          %668 = sbr.rel (%p666) target = $region68
        $region67: #{tpu_custom_call.1} parent=55 // pred_region
          %s669 = sand.u32 %s27, 1
          %s670 = scalar_lea.sflag [#allocation9], %s669
          %s671 = sand.u32 %s154, 1
          %s672 = scalar_lea.vmem [#allocation10], %s671
          %673 = dma.done %s670, 16
        $region68: #{tpu_custom_call.1} parent=55 // pred_fallthru
          _
      $region56: #{tpu_custom_call.1} parent=5 // pred_fallthru
        _
    $region6: #{tpu_custom_call.1} parent=1 // loop_footer
      %s25 = sadd.s32 1, %s21
    $region7: #{tpu_custom_call.1} parent=1 // loop_footer_branch
      %20 = sbr.rel target = $region3
    $region8: #{tpu_custom_call.1} parent=1 // loop_exit
      _
    %674 = vsyncpa [#allocation3], 1
    %s675 = scalar_lea.sflag [#allocation3], 1
    %676 = vsyncpa %s675, 1
    %677 = vsyncpa [#allocation6], 1
    %678 = vsyncpa [#allocation4], 1
    %s679 = scalar_lea.sflag [#allocation4], 1
    %680 = vsyncpa %s679, 1
    %681 = vsyncpa [#allocation9], 1
    %s682 = scalar_lea.sflag [#allocation9], 1
    %683 = vsyncpa %s682, 1

</llo_original>
